<compile_context>
chip_gen: v7x
topology: tpu7x:2x2x1
jax: 0.10.0
libtpu: 0.0.40
codegen_flags: <defaults>
</compile_context>

<pallas_src>
import functools

import jax
import jax.numpy as jnp
import numpy as np
from jax.experimental import pallas as pl
from jax.experimental.pallas import tpu as pltpu

LN_EPS = 1e-5  # torch.nn.LayerNorm default


def _round_up(a, m):
    return (a + m - 1) // m * m


def _cdiv(a, b):
    return (a + b - 1) // b


# -----------------------------------------------------------------------------
# kernel
# -----------------------------------------------------------------------------

def _make_kernel(hidden_sizes, obs_dim, h_pads):
    """hidden_sizes: true widths; obs_dim: true input width; h_pads: padded widths."""
    n = len(hidden_sizes)

    def _ln_stats(h, true_dim):
        # Fused, masked LayerNorm statistics (no affine).  Padded columns of the
        # pre-LN activation are exactly zero, so sums over the full (lane-dense)
        # width equal sums over the real features; divide by the TRUE width.
        inv = 1.0 / float(true_dim)
        s = jnp.sum(h, axis=-1, keepdims=True)
        ss = jnp.sum(h * h, axis=-1, keepdims=True)
        mu = s * inv
        var = jnp.maximum(ss * inv - mu * mu, 0.0)
        return (h - mu) * jax.lax.rsqrt(var + LN_EPS)

    def kernel(*refs):
        x_ref = refs[0]
        w_refs = refs[1:1 + n]
        pp_ref = refs[1 + n]          # rows 0..n-1: folded biases, row n / n+1:
        o_ref = refs[2 + n]           # final LN gamma / beta (all zero-padded)

        pp = pp_ref[...]              # (n+2, Hmax_pad) f32, one small load

        # feature_norm: affine already folded into W0/b0, only statistics here.
        h = _ln_stats(x_ref[...].astype(jnp.float32), obs_dim)

        for i, hi in enumerate(hidden_sizes):
            w = w_refs[i][...]
            hp = h_pads[i]
            a = h.astype(w.dtype) if w.dtype != jnp.float32 else h
            # Padded W rows/cols are zero -> padded pre-activation columns are 0.
            h = jnp.dot(a, w, preferred_element_type=jnp.float32) + pp[i:i + 1, :hp]
            h = jnp.maximum(h, 0.0)                      # ReLU (padding stays 0)
            h = _ln_stats(h, hi)                         # masked LN statistics
            if i == n - 1:
                # last LN keeps its affine; padded gamma/beta are 0 -> padded
                # output columns are 0 (sliced off by the wrapper anyway).
                h = h * pp[n:n + 1, :hp] + pp[n + 1:n + 2, :hp]
            # (for i < n-1 the LN affine was folded into the next layer's W/b)

        o_ref[...] = h.astype(o_ref.dtype)

    return kernel


# -----------------------------------------------------------------------------
# forward wrapper
# -----------------------------------------------------------------------------

@functools.partial(
    jax.jit,
    static_argnames=("hidden_sizes", "block_b", "min_grid_steps", "out_dtype",
                     "single_buffer"))
def _forward(x, weights, packed, *, hidden_sizes, block_b, min_grid_steps,
             out_dtype, single_buffer):
    B, obs_dim = x.shape
    n = len(hidden_sizes)
    obs_pad = int(weights[0].shape[0])
    h_pads = tuple(int(w.shape[1]) for w in weights)
    hout, hout_pad = hidden_sizes[-1], h_pads[-1]
    odt = np.dtype(out_dtype)

    # ---- batch tiling: balanced, sublane-aligned tiles; guarantee at least
    #      min_grid_steps grid steps so "parallel" shards across both v7x TCs.
    n_tiles = max(_cdiv(B, max(block_b, 8)), 1)
    if n_tiles < min_grid_steps and B >= min_grid_steps * 8:
        n_tiles = min_grid_steps
    TB = _round_up(_cdiv(B, n_tiles), 8)

    # ---- VMEM budget (v7x: 64 MiB physical).  Resident weights are single-
    #      buffered; x/out tiles are double-buffered by the pipeline; leave
    #      headroom for the unrolled layer loop's live (TB, Hmax) f32 temps.
    n_wbuf = 1 if single_buffer else 2
    wbytes = sum(int(w.size) * w.dtype.itemsize for w in weights) * n_wbuf
    pbytes = int(packed.size) * packed.dtype.itemsize * n_wbuf
    maxdim = max(h_pads + (obs_pad,))

    def vmem_est(tb):
        io = 2 * tb * obs_pad * x.dtype.itemsize + 2 * tb * hout_pad * odt.itemsize
        live = 4 * tb * maxdim * 4
        return wbytes + pbytes + io + live

    try:
        phys = int(pltpu.get_tpu_info().vmem_capacity_bytes)
    except Exception:
        phys = 64 * 1024 * 1024          # conservative (v7x per-TC VMEM)
    budget = min(phys * 3 // 4, 96 * 1024 * 1024)
    while TB > 8 and vmem_est(TB) > budget:
        TB = max(8, _round_up(TB // 2, 8))

    n_tiles = _cdiv(B, TB)
    B_pad = n_tiles * TB

    # Zero-pad batch rows and feature columns (zeros keep masked LN stats exact).
    if B_pad != B or obs_pad != obs_dim:
        x = jnp.pad(x, ((0, B_pad - B), (0, obs_pad - obs_dim)))

    def tile_map(i):
        return (i, 0)

    def zero_map(i):
        return (0, 0)

    if single_buffer:
        def resident(shape):
            # grid-invariant operand: one VMEM buffer is enough
            return pl.BlockSpec(shape, zero_map, pipeline_mode=pl.Buffered(1))
    else:
        def resident(shape):
            return pl.BlockSpec(shape, zero_map)

    in_specs = [pl.BlockSpec((TB, obs_pad), tile_map)]       # x: tiled on batch
    in_specs += [resident(tuple(w.shape)) for w in weights]  # weights: VMEM-resident
    in_specs.append(resident(tuple(packed.shape)))           # packed 1-D params
    out_spec = pl.BlockSpec((TB, hout_pad), tile_map)        # lane-dense out tile

    vmem_limit = int(min(phys, max(32 * 1024 * 1024, vmem_est(TB) * 2)))

    out = pl.pallas_call(
        _make_kernel(hidden_sizes, obs_dim, h_pads),
        out_shape=jax.ShapeDtypeStruct((B_pad, hout_pad), odt),
        grid=(n_tiles,),
        in_specs=in_specs,
        out_specs=out_spec,
        compiler_params=pltpu.CompilerParams(
            dimension_semantics=("parallel",),   # shard batch across TCs on v7x
            vmem_limit_bytes=vmem_limit,
        ),
    )(x, *weights, packed)

    return out[:B, :hout]


_SINGLE_BUFFER = True  # flipped off if this jax build lacks pipeline_mode/Buffered(1)


def mlp_base_forward(x, weights, packed, *, hidden_sizes, block_b=512,
                     min_grid_steps=2, out_dtype=None):
    """x: [B, obs_dim].  weights/packed: output of prepare_params().

    out_dtype: e.g. jnp.bfloat16 on v5e to halve HBM writeback (default: x.dtype).
    """
    global _SINGLE_BUFFER
    odt_name = np.dtype(out_dtype if out_dtype is not None else x.dtype).name
    common = dict(hidden_sizes=tuple(int(h) for h in hidden_sizes),
                  block_b=int(block_b), min_grid_steps=int(min_grid_steps),
                  out_dtype=odt_name)
    if _SINGLE_BUFFER:
        try:
            return _forward(x, weights, packed, single_buffer=True, **common)
        except Exception:
            # pipeline_mode=pl.Buffered(1) not supported -> default double buffering.
            _SINGLE_BUFFER = False
    return _forward(x, weights, packed, single_buffer=False, **common)


# -----------------------------------------------------------------------------
# parameter preparation (folding + lane padding + packing)
# -----------------------------------------------------------------------------

def prepare_params(params, obs_dim, hidden_sizes, weight_dtype=jnp.float32):
    """Fold LN affines into the following Linear, zero-pad widths to multiples of
    128 (lane-dense), and pack all 1-D params into one (n+2, Hmax_pad) array.

    weight_dtype=jnp.bfloat16 recommended on v6e/v7x (MXU-native, halves VMEM).
    """
    n = len(hidden_sizes)
    obs_pad = _round_up(obs_dim, 128)
    h_pads = [_round_up(h, 128) for h in hidden_sizes]
    hmax_pad = max(h_pads)

    def pad_row(v, width):
        v = v.astype(jnp.float32)
        return jnp.pad(v, (0, width - v.shape[0]))

    g, b = params["fn_gamma"], params["fn_beta"]   # affine preceding layer 0
    in_true, in_pad = obs_dim, obs_pad
    ws, bias_rows = [], []
    for i, (h, hp) in enumerate(zip(hidden_sizes, h_pads)):
        W = params[f"w{i}"]                        # [in_true, h]
        Wf = g[:, None] * W                        # fold preceding LN gamma
        bf = b @ W + params[f"b{i}"]               # fold preceding LN beta
        Wf = jnp.pad(Wf.astype(jnp.float32),
                     ((0, in_pad - in_true), (0, hp - h)))   # zero rows/cols
        ws.append(Wf.astype(weight_dtype))
        bias_rows.append(pad_row(bf, hmax_pad))
        if i < n - 1:
            g, b = params[f"ln{i}_gamma"], params[f"ln{i}_beta"]
        in_true, in_pad = h, hp

    rows = bias_rows + [pad_row(params[f"ln{n-1}_gamma"], hmax_pad),
                        pad_row(params[f"ln{n-1}_beta"], hmax_pad)]
    packed = jnp.stack(rows, axis=0)               # (n+2, Hmax_pad) f32
    return tuple(ws), packed


def _orthogonal(key, rows, cols, gain):
    # Deterministic orthogonal init (matches nn.init.orthogonal_ semantics).
    m = max(rows, cols)
    a = jax.random.normal(key, (m, m), dtype=jnp.float32)
    q, r = jnp.linalg.qr(a)
    q = q * jnp.sign(jnp.diag(r))
    return gain * q[:rows, :cols]


def init_params(key, obs_dim, hidden_sizes):
    # orthogonal init, gain = calculate_gain('relu') = sqrt(2); biases 0;
    # LayerNorm gamma=1, beta=0 (PyTorch defaults).
    gain = float(np.sqrt(2.0))
    params = {
        "fn_gamma": jnp.ones((obs_dim,), jnp.float32),
        "fn_beta": jnp.zeros((obs_dim,), jnp.float32),
    }
    in_dim = obs_dim
    keys = jax.random.split(key, len(hidden_sizes))
    for i, h in enumerate(hidden_sizes):
        # PyTorch Linear weight is [out, in]; store transposed [in, out].
        params[f"w{i}"] = _orthogonal(keys[i], h, in_dim, gain).T.astype(jnp.float32)
        params[f"b{i}"] = jnp.zeros((h,), jnp.float32)
        params[f"ln{i}_gamma"] = jnp.ones((h,), jnp.float32)
        params[f"ln{i}_beta"] = jnp.zeros((h,), jnp.float32)
        in_dim = h
    return params


# -----------------------------------------------------------------------------
# references for correctness checks
# -----------------------------------------------------------------------------

def ref_folded_jax(x, weights, packed, hidden_sizes):
    """Same math / operand order as the kernel (padded, fused masked stats)."""
    n = len(hidden_sizes)
    obs_dim = x.shape[1]
    obs_pad = weights[0].shape[0]
    h_pads = [w.shape[1] for w in weights]
    h = jnp.pad(x.astype(jnp.float32), ((0, 0), (0, obs_pad - obs_dim)))

    def ln_stats(h, true_dim):
        inv = 1.0 / float(true_dim)
        mu = jnp.sum(h, -1, keepdims=True) * inv
        var = jnp.maximum(jnp.sum(h * h, -1, keepdims=True) * inv - mu * mu, 0.0)
        return (h - mu) * jax.lax.rsqrt(var + LN_EPS)

    h = ln_stats(h, obs_dim)
    for i, hi in enumerate(hidden_sizes):
        w = weights[i]
        hp = h_pads[i]
        a = h.astype(w.dtype) if w.dtype != jnp.float32 else h
        h = jnp.dot(a, w, preferred_element_type=jnp.float32) + packed[i, :hp]
        h = jnp.maximum(h, 0.0)
        h = ln_stats(h, hi)
        if i == n - 1:
            h = h * packed[n, :hp] + packed[n + 1, :hp]
    return h[:, :hidden_sizes[-1]]


def ref_original_np(x, params, hidden_sizes):
    """Original (unfolded) MLPBase math in float64 numpy."""
    p = {k: np.asarray(v, np.float64) for k, v in params.items()}

    def ln(h, g, b):
        mu = h.mean(-1, keepdims=True)
        var = ((h - mu) ** 2).mean(-1, keepdims=True)
        return (h - mu) / np.sqrt(var + LN_EPS) * g + b

    h = ln(np.asarray(x, np.float64), p["fn_gamma"], p["fn_beta"])
    for i in range(len(hidden_sizes)):
        h = np.maximum(h @ p[f"w{i}"] + p[f"b{i}"], 0.0)
        h = ln(h, p[f"ln{i}_gamma"], p[f"ln{i}_beta"])
    return h


if __name__ == "__main__":
    key = jax.random.PRNGKey(0)
    kx, kp, kr = jax.random.split(key, 3)

    batch = 8
    obs_dim = 32
    hidden_sizes = (64, 64)

    x = jax.random.normal(kx, (batch, obs_dim), dtype=jnp.float32)
    params = init_params(kp, obs_dim, hidden_sizes)

    # Perturb LN affines / biases away from their identity init so the
    # algebraic folding path is genuinely exercised by the checks.
    ks = iter(jax.random.split(kr, 2 + 3 * len(hidden_sizes)))
    params["fn_gamma"] = 1.0 + 0.3 * jax.random.normal(next(ks), (obs_dim,), jnp.float32)
    params["fn_beta"] = 0.2 * jax.random.normal(next(ks), (obs_dim,), jnp.float32)
    for i, h in enumerate(hidden_sizes):
        params[f"b{i}"] = 0.1 * jax.random.normal(next(ks), (h,), jnp.float32)
        params[f"ln{i}_gamma"] = 1.0 + 0.3 * jax.random.normal(next(ks), (h,), jnp.float32)
        params[f"ln{i}_beta"] = 0.2 * jax.random.normal(next(ks), (h,), jnp.float32)

    # f32 weights here for tight checks; use weight_dtype=jnp.bfloat16 on v6e/v7x.
    weights, packed = prepare_params(params, obs_dim, hidden_sizes)

    out = mlp_base_forward(x, weights, packed, hidden_sizes=hidden_sizes, block_b=512)
    out = jax.block_until_ready(out)
    assert out.shape == (batch, hidden_sizes[-1])

    # (1) kernel vs identical-math JAX reference on the folded/padded params (tight).
    ref_f = ref_folded_jax(x, weights, packed, hidden_sizes)
    assert jnp.allclose(out, ref_f, atol=1e-4, rtol=1e-4), "kernel != folded JAX reference"

    # (2) kernel vs the original (unfolded) module math in float64 numpy —
    # validates folding + masked-stat padding end-to-end; loose tolerance absorbs
    # the TPU MXU's reduced-precision f32 matmul mode and the fused-variance form.
    ref_o = ref_original_np(x, params, hidden_sizes)
    assert np.allclose(np.asarray(out, np.float64), ref_o, atol=5e-2, rtol=5e-2), \
        "kernel != original MLPBase semantics"

    print("KERNEL_OK")
</pallas_src>

<mosaic_0001>
module attributes {stable_mosaic.version = 11 : i64} {
  func.func @kernel(%arg0: i32, %arg1: memref<8x128xf32, #tpu.memory_space<vmem>>, %arg2: memref<128x128xf32, #tpu.memory_space<vmem>>, %arg3: memref<128x128xf32, #tpu.memory_space<vmem>>, %arg4: memref<4x128xf32, #tpu.memory_space<vmem>>, %arg5: memref<8x128xf32, #tpu.memory_space<vmem>>) attributes {dimension_semantics = [#tpu.dimension_semantics<parallel>], iteration_bounds = array<i64: 1>, scalar_prefetch = 0 : i64, scratch_operands = 0 : i64, tpu.core_type = #tpu.core_type<tc>, window_params = [{transform_indices = @transform_0, window_bounds = array<i64: 8, 128>}, {pipeline_mode = #tpu.pipeline_mode<synchronous>, transform_indices = @transform_1, window_bounds = array<i64: 128, 128>}, {pipeline_mode = #tpu.pipeline_mode<synchronous>, transform_indices = @transform_2, window_bounds = array<i64: 128, 128>}, {pipeline_mode = #tpu.pipeline_mode<synchronous>, transform_indices = @transform_3, window_bounds = array<i64: 4, 128>}, {transform_indices = @transform_4, window_bounds = array<i64: 8, 128>}]} {
    %c0 = arith.constant 0 : index
    %c0_0 = arith.constant 0 : index
    %0 = vector.load %arg4[%c0, %c0_0] : memref<4x128xf32, #tpu.memory_space<vmem>>, vector<4x128xf32>
    %c0_1 = arith.constant 0 : index
    %c0_2 = arith.constant 0 : index
    %1 = vector.load %arg1[%c0_1, %c0_2] : memref<8x128xf32, #tpu.memory_space<vmem>>, vector<8x128xf32>
    %cst = arith.constant dense<0.000000e+00> : vector<8xf32>
    %2 = vector.multi_reduction <add>, %1, %cst [1] : vector<8x128xf32> to vector<8xf32>
    %3 = vector.shape_cast %2 : vector<8xf32> to vector<8x1xf32>
    %4 = arith.mulf %1, %1 : vector<8x128xf32>
    %cst_3 = arith.constant dense<0.000000e+00> : vector<8xf32>
    %5 = vector.multi_reduction <add>, %4, %cst_3 [1] : vector<8x128xf32> to vector<8xf32>
    %6 = vector.shape_cast %5 : vector<8xf32> to vector<8x1xf32>
    %cst_4 = arith.constant 3.125000e-02 : f32
    %7 = vector.broadcast %cst_4 : f32 to vector<8x1xf32>
    %8 = arith.mulf %3, %7 : vector<8x1xf32>
    %cst_5 = arith.constant 3.125000e-02 : f32
    %9 = vector.broadcast %cst_5 : f32 to vector<8x1xf32>
    %10 = arith.mulf %6, %9 : vector<8x1xf32>
    %11 = arith.mulf %8, %8 : vector<8x1xf32>
    %12 = arith.subf %10, %11 : vector<8x1xf32>
    %cst_6 = arith.constant 0.000000e+00 : f32
    %13 = vector.broadcast %cst_6 : f32 to vector<8x1xf32>
    %14 = arith.maximumf %12, %13 : vector<8x1xf32>
    %15 = vector.broadcast %8 : vector<8x1xf32> to vector<8x128xf32>
    %16 = arith.subf %1, %15 : vector<8x128xf32>
    %cst_7 = arith.constant 9.99999974E-6 : f32
    %17 = vector.broadcast %cst_7 : f32 to vector<8x1xf32>
    %18 = arith.addf %14, %17 : vector<8x1xf32>
    %19 = math.rsqrt %18 : vector<8x1xf32>
    %20 = vector.broadcast %19 : vector<8x1xf32> to vector<8x128xf32>
    %21 = arith.mulf %16, %20 : vector<8x128xf32>
    %c0_8 = arith.constant 0 : index
    %c0_9 = arith.constant 0 : index
    %22 = vector.load %arg2[%c0_8, %c0_9] : memref<128x128xf32, #tpu.memory_space<vmem>>, vector<128x128xf32>
    %cst_10 = arith.constant dense<0.000000e+00> : vector<8x128xf32>
    %23 = tpu.matmul %21, %22, %cst_10 {dimension_numbers = #tpu.dot_dimension_numbers<[1], [0], [0], [1], [0, 0, 1, 1], [], []>} : vector<8x128xf32>, vector<128x128xf32>, vector<8x128xf32> -> vector<8x128xf32>
    %24 = vector.extract_strided_slice %0 {offsets = [0, 0], sizes = [1, 128], strides = [1, 1]} : vector<4x128xf32> to vector<1x128xf32>
    %25 = vector.broadcast %24 : vector<1x128xf32> to vector<8x128xf32>
    %26 = arith.addf %23, %25 : vector<8x128xf32>
    %cst_11 = arith.constant 0.000000e+00 : f32
    %27 = vector.broadcast %cst_11 : f32 to vector<8x128xf32>
    %28 = arith.maximumf %26, %27 : vector<8x128xf32>
    %cst_12 = arith.constant dense<0.000000e+00> : vector<8xf32>
    %29 = vector.multi_reduction <add>, %28, %cst_12 [1] : vector<8x128xf32> to vector<8xf32>
    %30 = vector.shape_cast %29 : vector<8xf32> to vector<8x1xf32>
    %31 = arith.mulf %28, %28 : vector<8x128xf32>
    %cst_13 = arith.constant dense<0.000000e+00> : vector<8xf32>
    %32 = vector.multi_reduction <add>, %31, %cst_13 [1] : vector<8x128xf32> to vector<8xf32>
    %33 = vector.shape_cast %32 : vector<8xf32> to vector<8x1xf32>
    %cst_14 = arith.constant 1.562500e-02 : f32
    %34 = vector.broadcast %cst_14 : f32 to vector<8x1xf32>
    %35 = arith.mulf %30, %34 : vector<8x1xf32>
    %cst_15 = arith.constant 1.562500e-02 : f32
    %36 = vector.broadcast %cst_15 : f32 to vector<8x1xf32>
    %37 = arith.mulf %33, %36 : vector<8x1xf32>
    %38 = arith.mulf %35, %35 : vector<8x1xf32>
    %39 = arith.subf %37, %38 : vector<8x1xf32>
    %cst_16 = arith.constant 0.000000e+00 : f32
    %40 = vector.broadcast %cst_16 : f32 to vector<8x1xf32>
    %41 = arith.maximumf %39, %40 : vector<8x1xf32>
    %42 = vector.broadcast %35 : vector<8x1xf32> to vector<8x128xf32>
    %43 = arith.subf %28, %42 : vector<8x128xf32>
    %cst_17 = arith.constant 9.99999974E-6 : f32
    %44 = vector.broadcast %cst_17 : f32 to vector<8x1xf32>
    %45 = arith.addf %41, %44 : vector<8x1xf32>
    %46 = math.rsqrt %45 : vector<8x1xf32>
    %47 = vector.broadcast %46 : vector<8x1xf32> to vector<8x128xf32>
    %48 = arith.mulf %43, %47 : vector<8x128xf32>
    %c0_18 = arith.constant 0 : index
    %c0_19 = arith.constant 0 : index
    %49 = vector.load %arg3[%c0_18, %c0_19] : memref<128x128xf32, #tpu.memory_space<vmem>>, vector<128x128xf32>
    %cst_20 = arith.constant dense<0.000000e+00> : vector<8x128xf32>
    %50 = tpu.matmul %48, %49, %cst_20 {dimension_numbers = #tpu.dot_dimension_numbers<[1], [0], [0], [1], [0, 0, 1, 1], [], []>} : vector<8x128xf32>, vector<128x128xf32>, vector<8x128xf32> -> vector<8x128xf32>
    %51 = vector.extract_strided_slice %0 {offsets = [1, 0], sizes = [1, 128], strides = [1, 1]} : vector<4x128xf32> to vector<1x128xf32>
    %52 = vector.broadcast %51 : vector<1x128xf32> to vector<8x128xf32>
    %53 = arith.addf %50, %52 : vector<8x128xf32>
    %cst_21 = arith.constant 0.000000e+00 : f32
    %54 = vector.broadcast %cst_21 : f32 to vector<8x128xf32>
    %55 = arith.maximumf %53, %54 : vector<8x128xf32>
    %cst_22 = arith.constant dense<0.000000e+00> : vector<8xf32>
    %56 = vector.multi_reduction <add>, %55, %cst_22 [1] : vector<8x128xf32> to vector<8xf32>
    %57 = vector.shape_cast %56 : vector<8xf32> to vector<8x1xf32>
    %58 = arith.mulf %55, %55 : vector<8x128xf32>
    %cst_23 = arith.constant dense<0.000000e+00> : vector<8xf32>
    %59 = vector.multi_reduction <add>, %58, %cst_23 [1] : vector<8x128xf32> to vector<8xf32>
    %60 = vector.shape_cast %59 : vector<8xf32> to vector<8x1xf32>
    %cst_24 = arith.constant 1.562500e-02 : f32
    %61 = vector.broadcast %cst_24 : f32 to vector<8x1xf32>
    %62 = arith.mulf %57, %61 : vector<8x1xf32>
    %cst_25 = arith.constant 1.562500e-02 : f32
    %63 = vector.broadcast %cst_25 : f32 to vector<8x1xf32>
    %64 = arith.mulf %60, %63 : vector<8x1xf32>
    %65 = arith.mulf %62, %62 : vector<8x1xf32>
    %66 = arith.subf %64, %65 : vector<8x1xf32>
    %cst_26 = arith.constant 0.000000e+00 : f32
    %67 = vector.broadcast %cst_26 : f32 to vector<8x1xf32>
    %68 = arith.maximumf %66, %67 : vector<8x1xf32>
    %69 = vector.broadcast %62 : vector<8x1xf32> to vector<8x128xf32>
    %70 = arith.subf %55, %69 : vector<8x128xf32>
    %cst_27 = arith.constant 9.99999974E-6 : f32
    %71 = vector.broadcast %cst_27 : f32 to vector<8x1xf32>
    %72 = arith.addf %68, %71 : vector<8x1xf32>
    %73 = math.rsqrt %72 : vector<8x1xf32>
    %74 = vector.broadcast %73 : vector<8x1xf32> to vector<8x128xf32>
    %75 = arith.mulf %70, %74 : vector<8x128xf32>
    %76 = vector.extract_strided_slice %0 {offsets = [2, 0], sizes = [1, 128], strides = [1, 1]} : vector<4x128xf32> to vector<1x128xf32>
    %77 = vector.broadcast %76 : vector<1x128xf32> to vector<8x128xf32>
    %78 = arith.mulf %75, %77 : vector<8x128xf32>
    %79 = vector.extract_strided_slice %0 {offsets = [3, 0], sizes = [1, 128], strides = [1, 1]} : vector<4x128xf32> to vector<1x128xf32>
    %80 = vector.broadcast %79 : vector<1x128xf32> to vector<8x128xf32>
    %81 = arith.addf %78, %80 : vector<8x128xf32>
    %c0_28 = arith.constant 0 : index
    %c0_29 = arith.constant 0 : index
    %82 = vector.load %arg5[%c0_28, %c0_29] : memref<8x128xf32, #tpu.memory_space<vmem>>, vector<8x128xf32>
    tpu.vector_store %arg5[%c0_28, %c0_29], %81 {strides = array<i32>} : memref<8x128xf32, #tpu.memory_space<vmem>>, vector<8x128xf32>,
    return
  }
  func.func @transform_0(%arg0: i32) -> (i32, i32) {
    %c0_i32 = arith.constant 0 : i32
    %c0_i32_0 = arith.constant 0 : i32
    return %arg0, %c0_i32 : i32, i32
  }
  func.func @transform_1(%arg0: i32) -> (i32, i32) {
    %c0_i32 = arith.constant 0 : i32
    %c0_i32_0 = arith.constant 0 : i32
    %c0_i32_1 = arith.constant 0 : i32
    return %c0_i32, %c0_i32_0 : i32, i32
  }
  func.func @transform_2(%arg0: i32) -> (i32, i32) {
    %c0_i32 = arith.constant 0 : i32
    %c0_i32_0 = arith.constant 0 : i32
    %c0_i32_1 = arith.constant 0 : i32
    return %c0_i32, %c0_i32_0 : i32, i32
  }
  func.func @transform_3(%arg0: i32) -> (i32, i32) {
    %c0_i32 = arith.constant 0 : i32
    %c0_i32_0 = arith.constant 0 : i32
    %c0_i32_1 = arith.constant 0 : i32
    return %c0_i32, %c0_i32_0 : i32, i32
  }
  func.func @transform_4(%arg0: i32) -> (i32, i32) {
    %c0_i32 = arith.constant 0 : i32
    %c0_i32_0 = arith.constant 0 : i32
    return %arg0, %c0_i32 : i32, i32
  }
}

module attributes {stable_mosaic.version = 11 : i64} {
  func.func @kernel(%arg0: i32, %arg1: memref<8x128xf32, #tpu.memory_space<vmem>>, %arg2: memref<128x128xf32, #tpu.memory_space<vmem>>, %arg3: memref<128x128xf32, #tpu.memory_space<vmem>>, %arg4: memref<4x128xf32, #tpu.memory_space<vmem>>, %arg5: memref<8x128xf32, #tpu.memory_space<vmem>>) attributes {dimension_semantics = [#tpu.dimension_semantics<parallel>], iteration_bounds = array<i64: 1>, scalar_prefetch = 0 : i64, scratch_operands = 0 : i64, tpu.core_type = #tpu.core_type<tc>, window_params = [{transform_indices = @transform_0, window_bounds = array<i64: 8, 128>}, {pipeline_mode = #tpu.pipeline_mode<synchronous>, transform_indices = @transform_1, window_bounds = array<i64: 128, 128>}, {pipeline_mode = #tpu.pipeline_mode<synchronous>, transform_indices = @transform_2, window_bounds = array<i64: 128, 128>}, {pipeline_mode = #tpu.pipeline_mode<synchronous>, transform_indices = @transform_3, window_bounds = array<i64: 4, 128>}, {transform_indices = @transform_4, window_bounds = array<i64: 8, 128>}]} {
    %c0 = arith.constant 0 : index
    %c0_0 = arith.constant 0 : index
    %0 = vector.load %arg4[%c0, %c0_0] : memref<4x128xf32, #tpu.memory_space<vmem>>, vector<4x128xf32>
    %c0_1 = arith.constant 0 : index
    %c0_2 = arith.constant 0 : index
    %1 = vector.load %arg1[%c0_1, %c0_2] : memref<8x128xf32, #tpu.memory_space<vmem>>, vector<8x128xf32>
    %cst = arith.constant dense<0.000000e+00> : vector<8xf32>
    %2 = vector.multi_reduction <add>, %1, %cst [1] : vector<8x128xf32> to vector<8xf32>
    %3 = vector.shape_cast %2 : vector<8xf32> to vector<8x1xf32>
    %4 = arith.mulf %1, %1 : vector<8x128xf32>
    %cst_3 = arith.constant dense<0.000000e+00> : vector<8xf32>
    %5 = vector.multi_reduction <add>, %4, %cst_3 [1] : vector<8x128xf32> to vector<8xf32>
    %6 = vector.shape_cast %5 : vector<8xf32> to vector<8x1xf32>
    %cst_4 = arith.constant 3.125000e-02 : f32
    %7 = vector.broadcast %cst_4 : f32 to vector<8x1xf32>
    %8 = arith.mulf %3, %7 : vector<8x1xf32>
    %cst_5 = arith.constant 3.125000e-02 : f32
    %9 = vector.broadcast %cst_5 : f32 to vector<8x1xf32>
    %10 = arith.mulf %6, %9 : vector<8x1xf32>
    %11 = arith.mulf %8, %8 : vector<8x1xf32>
    %12 = arith.subf %10, %11 : vector<8x1xf32>
    %cst_6 = arith.constant 0.000000e+00 : f32
    %13 = vector.broadcast %cst_6 : f32 to vector<8x1xf32>
    %14 = arith.maximumf %12, %13 : vector<8x1xf32>
    %15 = vector.broadcast %8 : vector<8x1xf32> to vector<8x128xf32>
    %16 = arith.subf %1, %15 : vector<8x128xf32>
    %cst_7 = arith.constant 9.99999974E-6 : f32
    %17 = vector.broadcast %cst_7 : f32 to vector<8x1xf32>
    %18 = arith.addf %14, %17 : vector<8x1xf32>
    %19 = math.rsqrt %18 : vector<8x1xf32>
    %20 = vector.broadcast %19 : vector<8x1xf32> to vector<8x128xf32>
    %21 = arith.mulf %16, %20 : vector<8x128xf32>
    %c0_8 = arith.constant 0 : index
    %c0_9 = arith.constant 0 : index
    %22 = vector.load %arg2[%c0_8, %c0_9] : memref<128x128xf32, #tpu.memory_space<vmem>>, vector<128x128xf32>
    %cst_10 = arith.constant dense<0.000000e+00> : vector<8x128xf32>
    %23 = tpu.matmul %21, %22, %cst_10 {dimension_numbers = #tpu.dot_dimension_numbers<[1], [0], [0], [1], [0, 0, 1, 1], [], []>} : vector<8x128xf32>, vector<128x128xf32>, vector<8x128xf32> -> vector<8x128xf32>
    %24 = vector.extract_strided_slice %0 {offsets = [0, 0], sizes = [1, 128], strides = [1, 1]} : vector<4x128xf32> to vector<1x128xf32>
    %25 = vector.broadcast %24 : vector<1x128xf32> to vector<8x128xf32>
    %26 = arith.addf %23, %25 : vector<8x128xf32>
    %cst_11 = arith.constant 0.000000e+00 : f32
    %27 = vector.broadcast %cst_11 : f32 to vector<8x128xf32>
    %28 = arith.maximumf %26, %27 : vector<8x128xf32>
    %cst_12 = arith.constant dense<0.000000e+00> : vector<8xf32>
    %29 = vector.multi_reduction <add>, %28, %cst_12 [1] : vector<8x128xf32> to vector<8xf32>
    %30 = vector.shape_cast %29 : vector<8xf32> to vector<8x1xf32>
    %31 = arith.mulf %28, %28 : vector<8x128xf32>
    %cst_13 = arith.constant dense<0.000000e+00> : vector<8xf32>
    %32 = vector.multi_reduction <add>, %31, %cst_13 [1] : vector<8x128xf32> to vector<8xf32>
    %33 = vector.shape_cast %32 : vector<8xf32> to vector<8x1xf32>
    %cst_14 = arith.constant 1.562500e-02 : f32
    %34 = vector.broadcast %cst_14 : f32 to vector<8x1xf32>
    %35 = arith.mulf %30, %34 : vector<8x1xf32>
    %cst_15 = arith.constant 1.562500e-02 : f32
    %36 = vector.broadcast %cst_15 : f32 to vector<8x1xf32>
    %37 = arith.mulf %33, %36 : vector<8x1xf32>
    %38 = arith.mulf %35, %35 : vector<8x1xf32>
    %39 = arith.subf %37, %38 : vector<8x1xf32>
    %cst_16 = arith.constant 0.000000e+00 : f32
    %40 = vector.broadcast %cst_16 : f32 to vector<8x1xf32>
    %41 = arith.maximumf %39, %40 : vector<8x1xf32>
    %42 = vector.broadcast %35 : vector<8x1xf32> to vector<8x128xf32>
    %43 = arith.subf %28, %42 : vector<8x128xf32>
    %cst_17 = arith.constant 9.99999974E-6 : f32
    %44 = vector.broadcast %cst_17 : f32 to vector<8x1xf32>
    %45 = arith.addf %41, %44 : vector<8x1xf32>
    %46 = math.rsqrt %45 : vector<8x1xf32>
    %47 = vector.broadcast %46 : vector<8x1xf32> to vector<8x128xf32>
    %48 = arith.mulf %43, %47 : vector<8x128xf32>
    %c0_18 = arith.constant 0 : index
    %c0_19 = arith.constant 0 : index
    %49 = vector.load %arg3[%c0_18, %c0_19] : memref<128x128xf32, #tpu.memory_space<vmem>>, vector<128x128xf32>
    %cst_20 = arith.constant dense<0.000000e+00> : vector<8x128xf32>
    %50 = tpu.matmul %48, %49, %cst_20 {dimension_numbers = #tpu.dot_dimension_numbers<[1], [0], [0], [1], [0, 0, 1, 1], [], []>} : vector<8x128xf32>, vector<128x128xf32>, vector<8x128xf32> -> vector<8x128xf32>
    %51 = vector.extract_strided_slice %0 {offsets = [1, 0], sizes = [1, 128], strides = [1, 1]} : vector<4x128xf32> to vector<1x128xf32>
    %52 = vector.broadcast %51 : vector<1x128xf32> to vector<8x128xf32>
    %53 = arith.addf %50, %52 : vector<8x128xf32>
    %cst_21 = arith.constant 0.000000e+00 : f32
    %54 = vector.broadcast %cst_21 : f32 to vector<8x128xf32>
    %55 = arith.maximumf %53, %54 : vector<8x128xf32>
    %cst_22 = arith.constant dense<0.000000e+00> : vector<8xf32>
    %56 = vector.multi_reduction <add>, %55, %cst_22 [1] : vector<8x128xf32> to vector<8xf32>
    %57 = vector.shape_cast %56 : vector<8xf32> to vector<8x1xf32>
    %58 = arith.mulf %55, %55 : vector<8x128xf32>
    %cst_23 = arith.constant dense<0.000000e+00> : vector<8xf32>
    %59 = vector.multi_reduction <add>, %58, %cst_23 [1] : vector<8x128xf32> to vector<8xf32>
    %60 = vector.shape_cast %59 : vector<8xf32> to vector<8x1xf32>
    %cst_24 = arith.constant 1.562500e-02 : f32
    %61 = vector.broadcast %cst_24 : f32 to vector<8x1xf32>
    %62 = arith.mulf %57, %61 : vector<8x1xf32>
    %cst_25 = arith.constant 1.562500e-02 : f32
    %63 = vector.broadcast %cst_25 : f32 to vector<8x1xf32>
    %64 = arith.mulf %60, %63 : vector<8x1xf32>
    %65 = arith.mulf %62, %62 : vector<8x1xf32>
    %66 = arith.subf %64, %65 : vector<8x1xf32>
    %cst_26 = arith.constant 0.000000e+00 : f32
    %67 = vector.broadcast %cst_26 : f32 to vector<8x1xf32>
    %68 = arith.maximumf %66, %67 : vector<8x1xf32>
    %69 = vector.broadcast %62 : vector<8x1xf32> to vector<8x128xf32>
    %70 = arith.subf %55, %69 : vector<8x128xf32>
    %cst_27 = arith.constant 9.99999974E-6 : f32
    %71 = vector.broadcast %cst_27 : f32 to vector<8x1xf32>
    %72 = arith.addf %68, %71 : vector<8x1xf32>
    %73 = math.rsqrt %72 : vector<8x1xf32>
    %74 = vector.broadcast %73 : vector<8x1xf32> to vector<8x128xf32>
    %75 = arith.mulf %70, %74 : vector<8x128xf32>
    %76 = vector.extract_strided_slice %0 {offsets = [2, 0], sizes = [1, 128], strides = [1, 1]} : vector<4x128xf32> to vector<1x128xf32>
    %77 = vector.broadcast %76 : vector<1x128xf32> to vector<8x128xf32>
    %78 = arith.mulf %75, %77 : vector<8x128xf32>
    %79 = vector.extract_strided_slice %0 {offsets = [3, 0], sizes = [1, 128], strides = [1, 1]} : vector<4x128xf32> to vector<1x128xf32>
    %80 = vector.broadcast %79 : vector<1x128xf32> to vector<8x128xf32>
    %81 = arith.addf %78, %80 : vector<8x128xf32>
    %c0_28 = arith.constant 0 : index
    %c0_29 = arith.constant 0 : index
    %82 = vector.load %arg5[%c0_28, %c0_29] : memref<8x128xf32, #tpu.memory_space<vmem>>, vector<8x128xf32>
    tpu.vector_store %arg5[%c0_28, %c0_29], %81 {strides = array<i32>} : memref<8x128xf32, #tpu.memory_space<vmem>>, vector<8x128xf32>,
    return
  }
  func.func @transform_0(%arg0: i32) -> (i32, i32) {
    %c0_i32 = arith.constant 0 : i32
    %c0_i32_0 = arith.constant 0 : i32
    return %arg0, %c0_i32 : i32, i32
  }
  func.func @transform_1(%arg0: i32) -> (i32, i32) {
    %c0_i32 = arith.constant 0 : i32
    %c0_i32_0 = arith.constant 0 : i32
    %c0_i32_1 = arith.constant 0 : i32
    return %c0_i32, %c0_i32_0 : i32, i32
  }
  func.func @transform_2(%arg0: i32) -> (i32, i32) {
    %c0_i32 = arith.constant 0 : i32
    %c0_i32_0 = arith.constant 0 : i32
    %c0_i32_1 = arith.constant 0 : i32
    return %c0_i32, %c0_i32_0 : i32, i32
  }
  func.func @transform_3(%arg0: i32) -> (i32, i32) {
    %c0_i32 = arith.constant 0 : i32
    %c0_i32_0 = arith.constant 0 : i32
    %c0_i32_1 = arith.constant 0 : i32
    return %c0_i32, %c0_i32_0 : i32, i32
  }
  func.func @transform_4(%arg0: i32) -> (i32, i32) {
    %c0_i32 = arith.constant 0 : i32
    %c0_i32_0 = arith.constant 0 : i32
    return %arg0, %c0_i32 : i32, i32
  }
}

</mosaic_0001>

<llo_original>
// kernel: _forward.1
$region0: #{_forward.1}
  #allocation0 [shape = 'u32[]', space=smem, size = 0x4, offset = 0x4, fixed_abs, tag = 'smem constant byte address 0x4 - core index']
  #allocation1 [shape = 'u32[144,128]{1,0:T(1,128)}', space=vmem, size = 0x12000, scoped, tag = 'internal scratch']
  %s0 = inlined_call_operand.vmem [shape: f32[8,128], index: 0, kind: input, shape index: {}]
  %s1 = inlined_call_operand.hbm [shape: f32[128,128], index: 1, kind: input, shape index: {}]
  %s2 = inlined_call_operand.hbm [shape: f32[128,128], index: 2, kind: input, shape index: {}]
  %s3 = inlined_call_operand.vmem [shape: f32[4,128], index: 3, kind: input, shape index: {}]
  %s4 = inlined_call_operand.hbm [shape: f32[8,128], index: 4, kind: output, shape index: {}]
  %s5 = sld [smem:[#allocation0]]
  $region34: #{_forward.1} parent=0
    _
  %s7 = ssub.s32 1, %s5
  %s8 = scalar_select 0, %s7, %s5
  $region1: #{_forward.1} parent=0
    #allocation2 [shape = 'u8[65536]{0}', space=vmem, size = 0x10000, scoped, tag = 'input window, operand 1, single buffered']
    #allocation3 [shape = 's32[1]{0}', space=sflag, size = 0x4, scoped, tag = 'scoped memory for _forward.1']
    #allocation4 [shape = 's32[1]{0}', space=sflag, size = 0x4, scoped, tag = 'scoped memory for _forward.1']
    #allocation5 [shape = 'u8[65536]{0}', space=vmem, size = 0x10000, scoped, tag = 'input window, operand 2, single buffered']
    #allocation6 [shape = 's32[1]{0}', space=sflag, size = 0x4, scoped, tag = 'scoped memory for _forward.1']
    #allocation7 [shape = 'u8[4096]{0}', space=vmem, size = 0x1000, scoped, tag = 'output window, operand 0, single buffered']
    %9 = vsyncpa [#allocation3], 0
    %10 = vsyncpa [#allocation6], 0
    %11 = vsyncpa [#allocation4], 0
    // Predicated region
    $region2: #{_forward.1} parent=1 // pred_check
      _
    $region3: #{_forward.1} parent=1 // pred_check_branch
      %13 = sbr.rel (0) target = $region5
    $region4: #{_forward.1} parent=1 // pred_region
      _
    $region5: #{_forward.1} parent=1 // pred_fallthru
      _
    // Predicated region
    $region6: #{_forward.1} parent=1 // pred_check
      _
    $region7: #{_forward.1} parent=1 // pred_check_branch
      %15 = sbr.rel (0) target = $region9
    $region8: #{_forward.1} parent=1 // pred_region
      %s17 = ssub.s32 2048, 2048
      %18 = vsyncadd [#allocation3], %s17
      %s19 = sshll.u32 [#allocation2], 4
      %s20 = int_to_ptr.vmem [resolvable:$true] %s19
      %25 = dma.hbm_to_vmem [thread:$0]  %s1, 2048, %s20, [#allocation3], 128, 128, 8
    $region9: #{_forward.1} parent=1 // pred_fallthru
      _
    // Predicated region
    $region10: #{_forward.1} parent=1 // pred_check
      _
    $region11: #{_forward.1} parent=1 // pred_check_branch
      %27 = sbr.rel (0) target = $region13
    $region12: #{_forward.1} parent=1 // pred_region
      %s29 = ssub.s32 2048, 2048
      %30 = vsyncadd [#allocation6], %s29
      %s31 = sshll.u32 [#allocation5], 4
      %s32 = int_to_ptr.vmem [resolvable:$true] %s31
      %37 = dma.hbm_to_vmem [thread:$0]  %s2, 2048, %s32, [#allocation6], 128, 128, 8
    $region13: #{_forward.1} parent=1 // pred_fallthru
      _
    // Predicated region
    $region14: #{_forward.1} parent=1 // pred_check
      _
    $region15: #{_forward.1} parent=1 // pred_check_branch
      %39 = sbr.rel (0) target = $region17
    $region16: #{_forward.1} parent=1 // pred_region
      _
    $region17: #{_forward.1} parent=1 // pred_fallthru
      _
    // Predicated region
    $region18: #{_forward.1} parent=1 // pred_check
      _
    $region19: #{_forward.1} parent=1 // pred_check_branch
      %41 = sbr.rel (0) target = $region21
    $region20: #{_forward.1} parent=1 // pred_region
      %42 = dma.done [#allocation3], 2048
    $region21: #{_forward.1} parent=1 // pred_fallthru
      _
    // Predicated region
    $region22: #{_forward.1} parent=1 // pred_check
      _
    $region23: #{_forward.1} parent=1 // pred_check_branch
      %44 = sbr.rel (0) target = $region25
    $region24: #{_forward.1} parent=1 // pred_region
      %45 = dma.done [#allocation6], 2048
    $region25: #{_forward.1} parent=1 // pred_fallthru
      _
    %v46 = vld [vmem:[%s3] sm:$0xf]
    %v47 = vld [vmem:[%s0] sm:$0xff]
    %48 = vadd.xlane.f32.xlu0 %v47
    %v49 = vpop.xlane.xlu0 %48
    %v50 = vmul.f32 %v47, %v47
    %51 = vadd.xlane.f32.xlu0 %v50
    %v52 = vpop.xlane.xlu0 %51
    %v53 = vmul.f32 %v49, 0.03125
    %v54 = vmul.f32 %v52, 0.03125
    %v55 = vmul.f32 %v53, %v53
    %v56 = vsub.f32 %v54, %v55
    %v57 = vmax.f32 %v56, 0.0
    %v58 = vsub.f32 %v47, %v53
    %v59 = vadd.f32 %v57, 1e-05
    %v60 = vrsqrt.pop %v59
    %v61 = vmul.f32 %v58, %v60
    %v62 = vld [vmem:[#allocation2] sm:$0xff]
    %v63 = vld [vmem:[#allocation2 + $0x8] sm:$0xff]
    %v64 = vld [vmem:[#allocation2 + $0x10] sm:$0xff]
    %v65 = vld [vmem:[#allocation2 + $0x18] sm:$0xff]
    %v66 = vld [vmem:[#allocation2 + $0x20] sm:$0xff]
    %v67 = vld [vmem:[#allocation2 + $0x28] sm:$0xff]
    %v68 = vld [vmem:[#allocation2 + $0x30] sm:$0xff]
    %v69 = vld [vmem:[#allocation2 + $0x38] sm:$0xff]
    %v70 = vld [vmem:[#allocation2 + $0x40] sm:$0xff]
    %v71 = vld [vmem:[#allocation2 + $0x48] sm:$0xff]
    %v72 = vld [vmem:[#allocation2 + $0x50] sm:$0xff]
    %v73 = vld [vmem:[#allocation2 + $0x58] sm:$0xff]
    %v74 = vld [vmem:[#allocation2 + $0x60] sm:$0xff]
    %v75 = vld [vmem:[#allocation2 + $0x68] sm:$0xff]
    %v76 = vld [vmem:[#allocation2 + $0x70] sm:$0xff]
    %v77 = vld [vmem:[#allocation2 + $0x78] sm:$0xff]
    %v78 = vlaneseq
    %v79 = vshrl.u32 %v78, 7
    %v80 = vsub.s32 0, %v79
    %v81 = vrot.slane %v46, %v80
    %82 = vmatprep.subr.mxu0 0.0
    %83 = vmatpush1.msra.mxu0 %v62
    %84 = vmatprep.subr.mxu0 0.0
    %85 = vmatpush1.msra.mxu0 %v63
    %86 = vmatprep.subr.mxu0 0.0
    %87 = vmatpush1.msra.mxu0 %v64
    %88 = vmatprep.subr.mxu0 0.0
    %89 = vmatpush1.msra.mxu0 %v65
    %90 = vmatprep.subr.mxu0 0.0
    %91 = vmatpush1.msra.mxu0 %v66
    %92 = vmatprep.subr.mxu0 0.0
    %93 = vmatpush1.msra.mxu0 %v67
    %94 = vmatprep.subr.mxu0 0.0
    %95 = vmatpush1.msra.mxu0 %v68
    %96 = vmatprep.subr.mxu0 0.0
    %97 = vmatpush1.msra.mxu0 %v69
    %98 = vmatprep.subr.mxu0 0.0
    %99 = vmatpush1.msra.mxu0 %v70
    %100 = vmatprep.subr.mxu0 0.0
    %101 = vmatpush1.msra.mxu0 %v71
    %102 = vmatprep.subr.mxu0 0.0
    %103 = vmatpush1.msra.mxu0 %v72
    %104 = vmatprep.subr.mxu0 0.0
    %105 = vmatpush1.msra.mxu0 %v73
    %106 = vmatprep.subr.mxu0 0.0
    %107 = vmatpush1.msra.mxu0 %v74
    %108 = vmatprep.subr.mxu0 0.0
    %109 = vmatpush1.msra.mxu0 %v75
    %110 = vmatprep.subr.mxu0 0.0
    %111 = vmatpush1.msra.mxu0 %v76
    %112 = vmatprep.subr.mxu0 0.0
    %113 = vmatpush1.msra.mxu0 %v77
    %114 = vmatprep.subr.mxu0 0.0
    %115 = vmatpush1.msra.mxu0 0.0
    %116 = vmatprep.subr.mxu0 0.0
    %117 = vmatpush1.msra.mxu0 0.0
    %118 = vmatprep.subr.mxu0 0.0
    %119 = vmatpush1.msra.mxu0 0.0
    %120 = vmatprep.subr.mxu0 0.0
    %121 = vmatpush1.msra.mxu0 0.0
    %122 = vmatprep.subr.mxu0 0.0
    %123 = vmatpush1.msra.mxu0 0.0
    %124 = vmatprep.subr.mxu0 0.0
    %125 = vmatpush1.msra.mxu0 0.0
    %126 = vmatprep.subr.mxu0 0.0
    %127 = vmatpush1.msra.mxu0 0.0
    %128 = vmatprep.subr.mxu0 0.0
    %129 = vmatpush1.msra.mxu0 0.0
    %130 = vmatprep.subr.mxu0 0.0
    %131 = vmatpush1.msra.mxu0 0.0
    %132 = vmatprep.subr.mxu0 0.0
    %133 = vmatpush1.msra.mxu0 0.0
    %134 = vmatprep.subr.mxu0 0.0
    %135 = vmatpush1.msra.mxu0 0.0
    %136 = vmatprep.subr.mxu0 0.0
    %137 = vmatpush1.msra.mxu0 0.0
    %138 = vmatprep.subr.mxu0 0.0
    %139 = vmatpush1.msra.mxu0 0.0
    %140 = vmatprep.subr.mxu0 0.0
    %141 = vmatpush1.msra.mxu0 0.0
    %142 = vmatprep.subr.mxu0 0.0
    %143 = vmatpush1.msra.mxu0 0.0
    %144 = vmatprep.subr.mxu0 0.0
    %145 = vmatpush1.msra.mxu0 0.0
    %146 = vmatprep.mubr.f32.mxu0 0.0
    %147 = vmatmul.mubr.f32.gmra.mrb[0].mxu0 %v61
    %v148 = vpop.f32.mrb[0].mxu0
    %v149 = vadd.f32 %v81, %v148
    %v150 = vpop.f32.mrb[0].mxu0
    %151 = vdwg.mxu0
    %v152 = vmax.f32 %v149, 0.0
    %153 = vadd.xlane.f32.xlu0 %v152
    %v154 = vpop.xlane.xlu0 %153
    %v155 = vmul.f32 %v152, %v152
    %156 = vadd.xlane.f32.xlu0 %v155
    %v157 = vpop.xlane.xlu0 %156
    %v158 = vmul.f32 %v154, 0.015625
    %v159 = vmul.f32 %v157, 0.015625
    %v160 = vmul.f32 %v158, %v158
    %v161 = vsub.f32 %v159, %v160
    %v162 = vmax.f32 %v161, 0.0
    %v163 = vsub.f32 %v152, %v158
    %v164 = vadd.f32 %v162, 1e-05
    %v165 = vrsqrt.pop %v164
    %v166 = vmul.f32 %v163, %v165
    %v167 = vld [vmem:[#allocation5] sm:$0xff]
    %v168 = vld [vmem:[#allocation5 + $0x8] sm:$0xff]
    %v169 = vld [vmem:[#allocation5 + $0x10] sm:$0xff]
    %v170 = vld [vmem:[#allocation5 + $0x18] sm:$0xff]
    %v171 = vld [vmem:[#allocation5 + $0x20] sm:$0xff]
    %v172 = vld [vmem:[#allocation5 + $0x28] sm:$0xff]
    %v173 = vld [vmem:[#allocation5 + $0x30] sm:$0xff]
    %v174 = vld [vmem:[#allocation5 + $0x38] sm:$0xff]
    %v175 = vld [vmem:[#allocation5 + $0x40] sm:$0xff]
    %v176 = vld [vmem:[#allocation5 + $0x48] sm:$0xff]
    %v177 = vld [vmem:[#allocation5 + $0x50] sm:$0xff]
    %v178 = vld [vmem:[#allocation5 + $0x58] sm:$0xff]
    %v179 = vld [vmem:[#allocation5 + $0x60] sm:$0xff]
    %v180 = vld [vmem:[#allocation5 + $0x68] sm:$0xff]
    %v181 = vld [vmem:[#allocation5 + $0x70] sm:$0xff]
    %v182 = vld [vmem:[#allocation5 + $0x78] sm:$0xff]
    %v183 = vlaneseq
    %v184 = vshrl.u32 %v183, 7
    %v185 = vsub.s32 1, %v184
    %v186 = vrot.slane %v46, %v185
    %187 = vmatprep.subr.mxu0 0.0
    %188 = vmatpush1.msra.mxu0 %v167
    %189 = vmatprep.subr.mxu0 0.0
    %190 = vmatpush1.msra.mxu0 %v168
    %191 = vmatprep.subr.mxu0 0.0
    %192 = vmatpush1.msra.mxu0 %v169
    %193 = vmatprep.subr.mxu0 0.0
    %194 = vmatpush1.msra.mxu0 %v170
    %195 = vmatprep.subr.mxu0 0.0
    %196 = vmatpush1.msra.mxu0 %v171
    %197 = vmatprep.subr.mxu0 0.0
    %198 = vmatpush1.msra.mxu0 %v172
    %199 = vmatprep.subr.mxu0 0.0
    %200 = vmatpush1.msra.mxu0 %v173
    %201 = vmatprep.subr.mxu0 0.0
    %202 = vmatpush1.msra.mxu0 %v174
    %203 = vmatprep.subr.mxu0 0.0
    %204 = vmatpush1.msra.mxu0 %v175
    %205 = vmatprep.subr.mxu0 0.0
    %206 = vmatpush1.msra.mxu0 %v176
    %207 = vmatprep.subr.mxu0 0.0
    %208 = vmatpush1.msra.mxu0 %v177
    %209 = vmatprep.subr.mxu0 0.0
    %210 = vmatpush1.msra.mxu0 %v178
    %211 = vmatprep.subr.mxu0 0.0
    %212 = vmatpush1.msra.mxu0 %v179
    %213 = vmatprep.subr.mxu0 0.0
    %214 = vmatpush1.msra.mxu0 %v180
    %215 = vmatprep.subr.mxu0 0.0
    %216 = vmatpush1.msra.mxu0 %v181
    %217 = vmatprep.subr.mxu0 0.0
    %218 = vmatpush1.msra.mxu0 %v182
    %219 = vmatprep.subr.mxu0 0.0
    %220 = vmatpush1.msra.mxu0 0.0
    %221 = vmatprep.subr.mxu0 0.0
    %222 = vmatpush1.msra.mxu0 0.0
    %223 = vmatprep.subr.mxu0 0.0
    %224 = vmatpush1.msra.mxu0 0.0
    %225 = vmatprep.subr.mxu0 0.0
    %226 = vmatpush1.msra.mxu0 0.0
    %227 = vmatprep.subr.mxu0 0.0
    %228 = vmatpush1.msra.mxu0 0.0
    %229 = vmatprep.subr.mxu0 0.0
    %230 = vmatpush1.msra.mxu0 0.0
    %231 = vmatprep.subr.mxu0 0.0
    %232 = vmatpush1.msra.mxu0 0.0
    %233 = vmatprep.subr.mxu0 0.0
    %234 = vmatpush1.msra.mxu0 0.0
    %235 = vmatprep.subr.mxu0 0.0
    %236 = vmatpush1.msra.mxu0 0.0
    %237 = vmatprep.subr.mxu0 0.0
    %238 = vmatpush1.msra.mxu0 0.0
    %239 = vmatprep.subr.mxu0 0.0
    %240 = vmatpush1.msra.mxu0 0.0
    %241 = vmatprep.subr.mxu0 0.0
    %242 = vmatpush1.msra.mxu0 0.0
    %243 = vmatprep.subr.mxu0 0.0
    %244 = vmatpush1.msra.mxu0 0.0
    %245 = vmatprep.subr.mxu0 0.0
    %246 = vmatpush1.msra.mxu0 0.0
    %247 = vmatprep.subr.mxu0 0.0
    %248 = vmatpush1.msra.mxu0 0.0
    %249 = vmatprep.subr.mxu0 0.0
    %250 = vmatpush1.msra.mxu0 0.0
    %251 = vmatprep.mubr.f32.mxu0 0.0
    %252 = vmatmul.mubr.f32.gmra.mrb[0].mxu0 %v166
    %v253 = vpop.f32.mrb[0].mxu0
    %v254 = vadd.f32 %v186, %v253
    %v255 = vpop.f32.mrb[0].mxu0
    %256 = vdwg.mxu0
    %v257 = vmax.f32 %v254, 0.0
    %258 = vadd.xlane.f32.xlu0 %v257
    %v259 = vpop.xlane.xlu0 %258
    %v260 = vmul.f32 %v257, %v257
    %261 = vadd.xlane.f32.xlu0 %v260
    %v262 = vpop.xlane.xlu0 %261
    %v263 = vmul.f32 %v259, 0.015625
    %v264 = vmul.f32 %v262, 0.015625
    %v265 = vmul.f32 %v263, %v263
    %v266 = vsub.f32 %v264, %v265
    %v267 = vmax.f32 %v266, 0.0
    %v268 = vsub.f32 %v257, %v263
    %v269 = vadd.f32 %v267, 1e-05
    %v270 = vrsqrt.pop %v269
    %v271 = vmul.f32 %v268, %v270
    %v272 = vlaneseq
    %v273 = vshrl.u32 %v272, 7
    %v274 = vsub.s32 2, %v273
    %v275 = vrot.slane %v46, %v274
    %v276 = vmul.f32 %v271, %v275
    %v277 = vlaneseq
    %v278 = vshrl.u32 %v277, 7
    %v279 = vsub.s32 3, %v278
    %v280 = vrot.slane %v46, %v279
    %v281 = vadd.f32 %v276, %v280
    %282 = vst [vmem:[#allocation7] sm:$0xff] %v281
    // Predicated region
    $region26: #{_forward.1} parent=1 // pred_check
      _
    $region27: #{_forward.1} parent=1 // pred_check_branch
      %284 = sbr.rel (0) target = $region29
    $region28: #{_forward.1} parent=1 // pred_region
      %s286 = ssub.s32 128, 128
      %287 = vsyncadd [#allocation4], %s286
      %s289 = sshll.u32 [#allocation7], 4
      %s290 = int_to_ptr.vmem [resolvable:$true] %s289
      %292 = dma.vmem_to_hbm [thread:$0]  %s290, 128, %s4, [#allocation4]
    $region29: #{_forward.1} parent=1 // pred_fallthru
      _
    // Predicated region
    $region30: #{_forward.1} parent=1 // pred_check
      _
    $region31: #{_forward.1} parent=1 // pred_check_branch
      %294 = sbr.rel (0) target = $region33
    $region32: #{_forward.1} parent=1 // pred_region
      %295 = dma.done [#allocation4], 128
    $region33: #{_forward.1} parent=1 // pred_fallthru
      _
    %296 = vsyncpa [#allocation3], 1
    %297 = vsyncpa [#allocation6], 1
    %298 = vsyncpa [#allocation4], 1

// kernel: _forward.1
$region0: #{_forward.1}
  #allocation0 [shape = 'u32[]', space=smem, size = 0x4, offset = 0x4, fixed_abs, tag = 'smem constant byte address 0x4 - core index']
  #allocation1 [shape = 'u32[144,128]{1,0:T(1,128)}', space=vmem, size = 0x12000, scoped, tag = 'internal scratch']
  %s0 = inlined_call_operand.vmem [shape: f32[8,128], index: 0, kind: input, shape index: {}]
  %s1 = inlined_call_operand.hbm [shape: f32[128,128], index: 1, kind: input, shape index: {}]
  %s2 = inlined_call_operand.hbm [shape: f32[128,128], index: 2, kind: input, shape index: {}]
  %s3 = inlined_call_operand.vmem [shape: f32[4,128], index: 3, kind: input, shape index: {}]
  %s4 = inlined_call_operand.hbm [shape: f32[8,128], index: 4, kind: output, shape index: {}]
  %s5 = sld [smem:[#allocation0]]
  $region34: #{_forward.1} parent=0
    _
  %s7 = ssub.s32 1, %s5
  %s8 = scalar_select 0, %s7, %s5
  $region1: #{_forward.1} parent=0
    #allocation2 [shape = 'u8[65536]{0}', space=vmem, size = 0x10000, scoped, tag = 'input window, operand 1, single buffered']
    #allocation3 [shape = 's32[1]{0}', space=sflag, size = 0x4, scoped, tag = 'scoped memory for _forward.1']
    #allocation4 [shape = 's32[1]{0}', space=sflag, size = 0x4, scoped, tag = 'scoped memory for _forward.1']
    #allocation5 [shape = 'u8[65536]{0}', space=vmem, size = 0x10000, scoped, tag = 'input window, operand 2, single buffered']
    #allocation6 [shape = 's32[1]{0}', space=sflag, size = 0x4, scoped, tag = 'scoped memory for _forward.1']
    #allocation7 [shape = 'u8[4096]{0}', space=vmem, size = 0x1000, scoped, tag = 'output window, operand 0, single buffered']
    %9 = vsyncpa [#allocation3], 0
    %10 = vsyncpa [#allocation6], 0
    %11 = vsyncpa [#allocation4], 0
    // Predicated region
    $region2: #{_forward.1} parent=1 // pred_check
      _
    $region3: #{_forward.1} parent=1 // pred_check_branch
      %13 = sbr.rel (0) target = $region5
    $region4: #{_forward.1} parent=1 // pred_region
      _
    $region5: #{_forward.1} parent=1 // pred_fallthru
      _
    // Predicated region
    $region6: #{_forward.1} parent=1 // pred_check
      _
    $region7: #{_forward.1} parent=1 // pred_check_branch
      %15 = sbr.rel (0) target = $region9
    $region8: #{_forward.1} parent=1 // pred_region
      %s17 = ssub.s32 2048, 2048
      %18 = vsyncadd [#allocation3], %s17
      %s19 = sshll.u32 [#allocation2], 4
      %s20 = int_to_ptr.vmem [resolvable:$true] %s19
      %25 = dma.hbm_to_vmem [thread:$0]  %s1, 2048, %s20, [#allocation3], 128, 128, 8
    $region9: #{_forward.1} parent=1 // pred_fallthru
      _
    // Predicated region
    $region10: #{_forward.1} parent=1 // pred_check
      _
    $region11: #{_forward.1} parent=1 // pred_check_branch
      %27 = sbr.rel (0) target = $region13
    $region12: #{_forward.1} parent=1 // pred_region
      %s29 = ssub.s32 2048, 2048
      %30 = vsyncadd [#allocation6], %s29
      %s31 = sshll.u32 [#allocation5], 4
      %s32 = int_to_ptr.vmem [resolvable:$true] %s31
      %37 = dma.hbm_to_vmem [thread:$0]  %s2, 2048, %s32, [#allocation6], 128, 128, 8
    $region13: #{_forward.1} parent=1 // pred_fallthru
      _
    // Predicated region
    $region14: #{_forward.1} parent=1 // pred_check
      _
    $region15: #{_forward.1} parent=1 // pred_check_branch
      %39 = sbr.rel (0) target = $region17
    $region16: #{_forward.1} parent=1 // pred_region
      _
    $region17: #{_forward.1} parent=1 // pred_fallthru
      _
    // Predicated region
    $region18: #{_forward.1} parent=1 // pred_check
      _
    $region19: #{_forward.1} parent=1 // pred_check_branch
      %41 = sbr.rel (0) target = $region21
    $region20: #{_forward.1} parent=1 // pred_region
      %42 = dma.done [#allocation3], 2048
    $region21: #{_forward.1} parent=1 // pred_fallthru
      _
    // Predicated region
    $region22: #{_forward.1} parent=1 // pred_check
      _
    $region23: #{_forward.1} parent=1 // pred_check_branch
      %44 = sbr.rel (0) target = $region25
    $region24: #{_forward.1} parent=1 // pred_region
      %45 = dma.done [#allocation6], 2048
    $region25: #{_forward.1} parent=1 // pred_fallthru
      _
    %v46 = vld [vmem:[%s3] sm:$0xf]
    %v47 = vld [vmem:[%s0] sm:$0xff]
    %48 = vadd.xlane.f32.xlu0 %v47
    %v49 = vpop.xlane.xlu0 %48
    %v50 = vmul.f32 %v47, %v47
    %51 = vadd.xlane.f32.xlu0 %v50
    %v52 = vpop.xlane.xlu0 %51
    %v53 = vmul.f32 %v49, 0.03125
    %v54 = vmul.f32 %v52, 0.03125
    %v55 = vmul.f32 %v53, %v53
    %v56 = vsub.f32 %v54, %v55
    %v57 = vmax.f32 %v56, 0.0
    %v58 = vsub.f32 %v47, %v53
    %v59 = vadd.f32 %v57, 1e-05
    %v60 = vrsqrt.pop %v59
    %v61 = vmul.f32 %v58, %v60
    %v62 = vld [vmem:[#allocation2] sm:$0xff]
    %v63 = vld [vmem:[#allocation2 + $0x8] sm:$0xff]
    %v64 = vld [vmem:[#allocation2 + $0x10] sm:$0xff]
    %v65 = vld [vmem:[#allocation2 + $0x18] sm:$0xff]
    %v66 = vld [vmem:[#allocation2 + $0x20] sm:$0xff]
    %v67 = vld [vmem:[#allocation2 + $0x28] sm:$0xff]
    %v68 = vld [vmem:[#allocation2 + $0x30] sm:$0xff]
    %v69 = vld [vmem:[#allocation2 + $0x38] sm:$0xff]
    %v70 = vld [vmem:[#allocation2 + $0x40] sm:$0xff]
    %v71 = vld [vmem:[#allocation2 + $0x48] sm:$0xff]
    %v72 = vld [vmem:[#allocation2 + $0x50] sm:$0xff]
    %v73 = vld [vmem:[#allocation2 + $0x58] sm:$0xff]
    %v74 = vld [vmem:[#allocation2 + $0x60] sm:$0xff]
    %v75 = vld [vmem:[#allocation2 + $0x68] sm:$0xff]
    %v76 = vld [vmem:[#allocation2 + $0x70] sm:$0xff]
    %v77 = vld [vmem:[#allocation2 + $0x78] sm:$0xff]
    %v78 = vlaneseq
    %v79 = vshrl.u32 %v78, 7
    %v80 = vsub.s32 0, %v79
    %v81 = vrot.slane %v46, %v80
    %82 = vmatprep.subr.mxu0 0.0
    %83 = vmatpush1.msra.mxu0 %v62
    %84 = vmatprep.subr.mxu0 0.0
    %85 = vmatpush1.msra.mxu0 %v63
    %86 = vmatprep.subr.mxu0 0.0
    %87 = vmatpush1.msra.mxu0 %v64
    %88 = vmatprep.subr.mxu0 0.0
    %89 = vmatpush1.msra.mxu0 %v65
    %90 = vmatprep.subr.mxu0 0.0
    %91 = vmatpush1.msra.mxu0 %v66
    %92 = vmatprep.subr.mxu0 0.0
    %93 = vmatpush1.msra.mxu0 %v67
    %94 = vmatprep.subr.mxu0 0.0
    %95 = vmatpush1.msra.mxu0 %v68
    %96 = vmatprep.subr.mxu0 0.0
    %97 = vmatpush1.msra.mxu0 %v69
    %98 = vmatprep.subr.mxu0 0.0
    %99 = vmatpush1.msra.mxu0 %v70
    %100 = vmatprep.subr.mxu0 0.0
    %101 = vmatpush1.msra.mxu0 %v71
    %102 = vmatprep.subr.mxu0 0.0
    %103 = vmatpush1.msra.mxu0 %v72
    %104 = vmatprep.subr.mxu0 0.0
    %105 = vmatpush1.msra.mxu0 %v73
    %106 = vmatprep.subr.mxu0 0.0
    %107 = vmatpush1.msra.mxu0 %v74
    %108 = vmatprep.subr.mxu0 0.0
    %109 = vmatpush1.msra.mxu0 %v75
    %110 = vmatprep.subr.mxu0 0.0
    %111 = vmatpush1.msra.mxu0 %v76
    %112 = vmatprep.subr.mxu0 0.0
    %113 = vmatpush1.msra.mxu0 %v77
    %114 = vmatprep.subr.mxu0 0.0
    %115 = vmatpush1.msra.mxu0 0.0
    %116 = vmatprep.subr.mxu0 0.0
    %117 = vmatpush1.msra.mxu0 0.0
    %118 = vmatprep.subr.mxu0 0.0
    %119 = vmatpush1.msra.mxu0 0.0
    %120 = vmatprep.subr.mxu0 0.0
    %121 = vmatpush1.msra.mxu0 0.0
    %122 = vmatprep.subr.mxu0 0.0
    %123 = vmatpush1.msra.mxu0 0.0
    %124 = vmatprep.subr.mxu0 0.0
    %125 = vmatpush1.msra.mxu0 0.0
    %126 = vmatprep.subr.mxu0 0.0
    %127 = vmatpush1.msra.mxu0 0.0
    %128 = vmatprep.subr.mxu0 0.0
    %129 = vmatpush1.msra.mxu0 0.0
    %130 = vmatprep.subr.mxu0 0.0
    %131 = vmatpush1.msra.mxu0 0.0
    %132 = vmatprep.subr.mxu0 0.0
    %133 = vmatpush1.msra.mxu0 0.0
    %134 = vmatprep.subr.mxu0 0.0
    %135 = vmatpush1.msra.mxu0 0.0
    %136 = vmatprep.subr.mxu0 0.0
    %137 = vmatpush1.msra.mxu0 0.0
    %138 = vmatprep.subr.mxu0 0.0
    %139 = vmatpush1.msra.mxu0 0.0
    %140 = vmatprep.subr.mxu0 0.0
    %141 = vmatpush1.msra.mxu0 0.0
    %142 = vmatprep.subr.mxu0 0.0
    %143 = vmatpush1.msra.mxu0 0.0
    %144 = vmatprep.subr.mxu0 0.0
    %145 = vmatpush1.msra.mxu0 0.0
    %146 = vmatprep.mubr.f32.mxu0 0.0
    %147 = vmatmul.mubr.f32.gmra.mrb[0].mxu0 %v61
    %v148 = vpop.f32.mrb[0].mxu0
    %v149 = vadd.f32 %v81, %v148
    %v150 = vpop.f32.mrb[0].mxu0
    %151 = vdwg.mxu0
    %v152 = vmax.f32 %v149, 0.0
    %153 = vadd.xlane.f32.xlu0 %v152
    %v154 = vpop.xlane.xlu0 %153
    %v155 = vmul.f32 %v152, %v152
    %156 = vadd.xlane.f32.xlu0 %v155
    %v157 = vpop.xlane.xlu0 %156
    %v158 = vmul.f32 %v154, 0.015625
    %v159 = vmul.f32 %v157, 0.015625
    %v160 = vmul.f32 %v158, %v158
    %v161 = vsub.f32 %v159, %v160
    %v162 = vmax.f32 %v161, 0.0
    %v163 = vsub.f32 %v152, %v158
    %v164 = vadd.f32 %v162, 1e-05
    %v165 = vrsqrt.pop %v164
    %v166 = vmul.f32 %v163, %v165
    %v167 = vld [vmem:[#allocation5] sm:$0xff]
    %v168 = vld [vmem:[#allocation5 + $0x8] sm:$0xff]
    %v169 = vld [vmem:[#allocation5 + $0x10] sm:$0xff]
    %v170 = vld [vmem:[#allocation5 + $0x18] sm:$0xff]
    %v171 = vld [vmem:[#allocation5 + $0x20] sm:$0xff]
    %v172 = vld [vmem:[#allocation5 + $0x28] sm:$0xff]
    %v173 = vld [vmem:[#allocation5 + $0x30] sm:$0xff]
    %v174 = vld [vmem:[#allocation5 + $0x38] sm:$0xff]
    %v175 = vld [vmem:[#allocation5 + $0x40] sm:$0xff]
    %v176 = vld [vmem:[#allocation5 + $0x48] sm:$0xff]
    %v177 = vld [vmem:[#allocation5 + $0x50] sm:$0xff]
    %v178 = vld [vmem:[#allocation5 + $0x58] sm:$0xff]
    %v179 = vld [vmem:[#allocation5 + $0x60] sm:$0xff]
    %v180 = vld [vmem:[#allocation5 + $0x68] sm:$0xff]
    %v181 = vld [vmem:[#allocation5 + $0x70] sm:$0xff]
    %v182 = vld [vmem:[#allocation5 + $0x78] sm:$0xff]
    %v183 = vlaneseq
    %v184 = vshrl.u32 %v183, 7
    %v185 = vsub.s32 1, %v184
    %v186 = vrot.slane %v46, %v185
    %187 = vmatprep.subr.mxu0 0.0
    %188 = vmatpush1.msra.mxu0 %v167
    %189 = vmatprep.subr.mxu0 0.0
    %190 = vmatpush1.msra.mxu0 %v168
    %191 = vmatprep.subr.mxu0 0.0
    %192 = vmatpush1.msra.mxu0 %v169
    %193 = vmatprep.subr.mxu0 0.0
    %194 = vmatpush1.msra.mxu0 %v170
    %195 = vmatprep.subr.mxu0 0.0
    %196 = vmatpush1.msra.mxu0 %v171
    %197 = vmatprep.subr.mxu0 0.0
    %198 = vmatpush1.msra.mxu0 %v172
    %199 = vmatprep.subr.mxu0 0.0
    %200 = vmatpush1.msra.mxu0 %v173
    %201 = vmatprep.subr.mxu0 0.0
    %202 = vmatpush1.msra.mxu0 %v174
    %203 = vmatprep.subr.mxu0 0.0
    %204 = vmatpush1.msra.mxu0 %v175
    %205 = vmatprep.subr.mxu0 0.0
    %206 = vmatpush1.msra.mxu0 %v176
    %207 = vmatprep.subr.mxu0 0.0
    %208 = vmatpush1.msra.mxu0 %v177
    %209 = vmatprep.subr.mxu0 0.0
    %210 = vmatpush1.msra.mxu0 %v178
    %211 = vmatprep.subr.mxu0 0.0
    %212 = vmatpush1.msra.mxu0 %v179
    %213 = vmatprep.subr.mxu0 0.0
    %214 = vmatpush1.msra.mxu0 %v180
    %215 = vmatprep.subr.mxu0 0.0
    %216 = vmatpush1.msra.mxu0 %v181
    %217 = vmatprep.subr.mxu0 0.0
    %218 = vmatpush1.msra.mxu0 %v182
    %219 = vmatprep.subr.mxu0 0.0
    %220 = vmatpush1.msra.mxu0 0.0
    %221 = vmatprep.subr.mxu0 0.0
    %222 = vmatpush1.msra.mxu0 0.0
    %223 = vmatprep.subr.mxu0 0.0
    %224 = vmatpush1.msra.mxu0 0.0
    %225 = vmatprep.subr.mxu0 0.0
    %226 = vmatpush1.msra.mxu0 0.0
    %227 = vmatprep.subr.mxu0 0.0
    %228 = vmatpush1.msra.mxu0 0.0
    %229 = vmatprep.subr.mxu0 0.0
    %230 = vmatpush1.msra.mxu0 0.0
    %231 = vmatprep.subr.mxu0 0.0
    %232 = vmatpush1.msra.mxu0 0.0
    %233 = vmatprep.subr.mxu0 0.0
    %234 = vmatpush1.msra.mxu0 0.0
    %235 = vmatprep.subr.mxu0 0.0
    %236 = vmatpush1.msra.mxu0 0.0
    %237 = vmatprep.subr.mxu0 0.0
    %238 = vmatpush1.msra.mxu0 0.0
    %239 = vmatprep.subr.mxu0 0.0
    %240 = vmatpush1.msra.mxu0 0.0
    %241 = vmatprep.subr.mxu0 0.0
    %242 = vmatpush1.msra.mxu0 0.0
    %243 = vmatprep.subr.mxu0 0.0
    %244 = vmatpush1.msra.mxu0 0.0
    %245 = vmatprep.subr.mxu0 0.0
    %246 = vmatpush1.msra.mxu0 0.0
    %247 = vmatprep.subr.mxu0 0.0
    %248 = vmatpush1.msra.mxu0 0.0
    %249 = vmatprep.subr.mxu0 0.0
    %250 = vmatpush1.msra.mxu0 0.0
    %251 = vmatprep.mubr.f32.mxu0 0.0
    %252 = vmatmul.mubr.f32.gmra.mrb[0].mxu0 %v166
    %v253 = vpop.f32.mrb[0].mxu0
    %v254 = vadd.f32 %v186, %v253
    %v255 = vpop.f32.mrb[0].mxu0
    %256 = vdwg.mxu0
    %v257 = vmax.f32 %v254, 0.0
    %258 = vadd.xlane.f32.xlu0 %v257
    %v259 = vpop.xlane.xlu0 %258
    %v260 = vmul.f32 %v257, %v257
    %261 = vadd.xlane.f32.xlu0 %v260
    %v262 = vpop.xlane.xlu0 %261
    %v263 = vmul.f32 %v259, 0.015625
    %v264 = vmul.f32 %v262, 0.015625
    %v265 = vmul.f32 %v263, %v263
    %v266 = vsub.f32 %v264, %v265
    %v267 = vmax.f32 %v266, 0.0
    %v268 = vsub.f32 %v257, %v263
    %v269 = vadd.f32 %v267, 1e-05
    %v270 = vrsqrt.pop %v269
    %v271 = vmul.f32 %v268, %v270
    %v272 = vlaneseq
    %v273 = vshrl.u32 %v272, 7
    %v274 = vsub.s32 2, %v273
    %v275 = vrot.slane %v46, %v274
    %v276 = vmul.f32 %v271, %v275
    %v277 = vlaneseq
    %v278 = vshrl.u32 %v277, 7
    %v279 = vsub.s32 3, %v278
    %v280 = vrot.slane %v46, %v279
    %v281 = vadd.f32 %v276, %v280
    %282 = vst [vmem:[#allocation7] sm:$0xff] %v281
    // Predicated region
    $region26: #{_forward.1} parent=1 // pred_check
      _
    $region27: #{_forward.1} parent=1 // pred_check_branch
      %284 = sbr.rel (0) target = $region29
    $region28: #{_forward.1} parent=1 // pred_region
      %s286 = ssub.s32 128, 128
      %287 = vsyncadd [#allocation4], %s286
      %s289 = sshll.u32 [#allocation7], 4
      %s290 = int_to_ptr.vmem [resolvable:$true] %s289
      %292 = dma.vmem_to_hbm [thread:$0]  %s290, 128, %s4, [#allocation4]
    $region29: #{_forward.1} parent=1 // pred_fallthru
      _
    // Predicated region
    $region30: #{_forward.1} parent=1 // pred_check
      _
    $region31: #{_forward.1} parent=1 // pred_check_branch
      %294 = sbr.rel (0) target = $region33
    $region32: #{_forward.1} parent=1 // pred_region
      %295 = dma.done [#allocation4], 128
    $region33: #{_forward.1} parent=1 // pred_fallthru
      _
    %296 = vsyncpa [#allocation3], 1
    %297 = vsyncpa [#allocation6], 1
    %298 = vsyncpa [#allocation4], 1

</llo_original>
